<compile_context>
chip_gen: v6e
topology: v6e:2x2x1
jax: 0.10.0
libtpu: 0.0.40
codegen_flags: <defaults>
</compile_context>

<pallas_src>
import functools
import math

import jax
import jax.numpy as jnp
from jax import lax
from jax.experimental import pallas as pl
from jax.experimental.pallas import tpu as pltpu


def _arc_margin_kernel(x_ref, w_ref, lab_ref, o_ref, *,
                       cos_m, sin_m, th, mm, s, easy_margin):
    j = pl.program_id(1)
    tm, tn = o_ref.shape

    # F.normalize(input, dim=1): x / max(||x||_2, 1e-12)
    x = x_ref[...].astype(jnp.float32)                       # (tm, K)
    x_norm = jnp.sqrt(jnp.sum(x * x, axis=1, keepdims=True))
    xn = x / jnp.maximum(x_norm, 1e-12)

    # F.normalize(weight, dim=1) for this tile of class rows
    w = w_ref[...].astype(jnp.float32)                       # (tn, K)
    w_norm = jnp.sqrt(jnp.sum(w * w, axis=1, keepdims=True))
    wn = w / jnp.maximum(w_norm, 1e-12)

    # cosine = xn @ wn.T -- bf16 operands, f32 accumulation on the MXU
    cosine = lax.dot_general(
        xn.astype(jnp.bfloat16), wn.astype(jnp.bfloat16),
        dimension_numbers=(((1,), (1,)), ((), ())),
        preferred_element_type=jnp.float32)                  # (tm, tn)

    sine = jnp.sqrt(jnp.clip(1.0 - cosine * cosine, 0.0, 1.0))
    phi = cosine * cos_m - sine * sin_m
    if easy_margin:
        phi = jnp.where(cosine > 0.0, phi, cosine)
    else:
        phi = jnp.where(cosine > th, phi, cosine - mm)

    # one_hot.scatter_ replaced by global-column-index == label compare
    col = j * tn + lax.broadcasted_iota(jnp.int32, (tm, tn), 1)
    is_target = col == lab_ref[...]                          # (tm, 1) broadcasts
    o_ref[...] = (jnp.where(is_target, phi, cosine) * s).astype(o_ref.dtype)


def _round_up(v, m):
    return (v + m - 1) // m * m


def arc_margin_product(x, label, weight, *, s=30.0, m=0.5, easy_margin=False):
    """ArcMarginProduct.forward(input, label) as one Pallas TPU kernel.

    x: (B, in_features) float, label: (B,) int, weight: (out_features, in_features).
    Returns (B, out_features) float32 logits.
    """
    B, K = x.shape
    N, K_w = weight.shape
    assert K_w == K

    # Tile sizes: full MXU tiles when the problem is big enough, minimal
    # sublane-aligned tiles for toy shapes.
    tile_m = 128 if B >= 128 else 8
    tile_n = 256 if N >= 512 else 128

    Bp = _round_up(B, tile_m)
    Np = _round_up(N, tile_n)

    xf = jnp.pad(x.astype(jnp.float32), ((0, Bp - B), (0, 0)))
    wf = jnp.pad(weight.astype(jnp.float32), ((0, Np - N), (0, 0)))
    lab = jnp.pad(label.astype(jnp.int32).reshape(B, 1), ((0, Bp - B), (0, 0)))

    grid = (Bp // tile_m, Np // tile_n)

    kernel = functools.partial(
        _arc_margin_kernel,
        cos_m=math.cos(m), sin_m=math.sin(m),
        th=math.cos(math.pi - m), mm=math.sin(math.pi - m) * m,
        s=s, easy_margin=easy_margin)

    flops = 2 * Bp * Np * K + 10 * Bp * Np
    bytes_accessed = 4 * (Bp * K + Np * K + Bp * Np + Bp)

    out = pl.pallas_call(
        kernel,
        grid=grid,
        in_specs=[
            pl.BlockSpec((tile_m, K), lambda i, j: (i, 0)),   # x batch tile
            pl.BlockSpec((tile_n, K), lambda i, j: (j, 0)),   # weight class tile
            pl.BlockSpec((tile_m, 1), lambda i, j: (i, 0)),   # labels
        ],
        out_specs=pl.BlockSpec((tile_m, tile_n), lambda i, j: (i, j)),
        out_shape=jax.ShapeDtypeStruct((Bp, Np), jnp.float32),
        compiler_params=pltpu.CompilerParams(
            dimension_semantics=("parallel", "parallel")),
        cost_estimate=pl.CostEstimate(
            flops=flops, transcendentals=Bp * Np + Bp + Np,
            bytes_accessed=bytes_accessed),
    )(xf, wf, lab)

    return out[:B, :N]


def arc_margin_reference(x, label, weight, *, s=30.0, m=0.5, easy_margin=False):
    """Pure-JAX f32 reference mirroring the PyTorch module."""
    xn = x / jnp.maximum(jnp.linalg.norm(x, axis=1, keepdims=True), 1e-12)
    wn = weight / jnp.maximum(jnp.linalg.norm(weight, axis=1, keepdims=True), 1e-12)
    cosine = xn @ wn.T
    sine = jnp.sqrt(jnp.clip(1.0 - cosine * cosine, 0.0, 1.0))
    phi = cosine * math.cos(m) - sine * math.sin(m)
    if easy_margin:
        phi = jnp.where(cosine > 0, phi, cosine)
    else:
        phi = jnp.where(cosine > math.cos(math.pi - m), phi,
                        cosine - math.sin(math.pi - m) * m)
    one_hot = jax.nn.one_hot(label, weight.shape[0], dtype=cosine.dtype)
    return s * (one_hot * phi + (1.0 - one_hot) * cosine)


if __name__ == "__main__":
    B, in_features, out_features = 16, 512, 256

    key = jax.random.PRNGKey(0)
    kx, kw, kl = jax.random.split(key, 3)
    x = jax.random.normal(kx, (B, in_features), jnp.float32)
    bound = math.sqrt(6.0 / (in_features + out_features))     # xavier_uniform_
    weight = jax.random.uniform(kw, (out_features, in_features), jnp.float32,
                                minval=-bound, maxval=bound)
    label = jax.random.randint(kl, (B,), 0, out_features, jnp.int32)

    out = arc_margin_product(x, label, weight, s=30.0, m=0.5, easy_margin=False)
    out = jax.block_until_ready(out)

    ref = arc_margin_reference(x, label, weight, s=30.0, m=0.5, easy_margin=False)
    assert out.shape == (B, out_features)
    assert bool(jnp.all(jnp.isfinite(out)))
    max_err = float(jnp.max(jnp.abs(out - ref)))
    assert max_err < 0.3, f"max abs error {max_err}"
    print("KERNEL_OK")
</pallas_src>

<mosaic_0001>
module attributes {stable_mosaic.version = 11 : i64} {
  func.func @_arc_margin_kernel(%arg0: i32, %arg1: i32, %arg2: memref<8x512xf32, #tpu.memory_space<vmem>>, %arg3: memref<128x512xf32, #tpu.memory_space<vmem>>, %arg4: memref<8x1xi32, #tpu.memory_space<vmem>>, %arg5: memref<8x128xf32, #tpu.memory_space<vmem>>) attributes {dimension_semantics = [#tpu.dimension_semantics<parallel>, #tpu.dimension_semantics<parallel>], iteration_bounds = array<i64: 2, 2>, scalar_prefetch = 0 : i64, scratch_operands = 0 : i64, tpu.core_type = #tpu.core_type<tc>, window_params = [{transform_indices = @transform_0, window_bounds = array<i64: 8, 512>}, {transform_indices = @transform_1, window_bounds = array<i64: 128, 512>}, {transform_indices = @transform_2, window_bounds = array<i64: 8, 1>}, {transform_indices = @transform_3, window_bounds = array<i64: 8, 128>}]} {
    %c0 = arith.constant 0 : index
    %c0_0 = arith.constant 0 : index
    %0 = vector.load %arg2[%c0, %c0_0] : memref<8x512xf32, #tpu.memory_space<vmem>>, vector<8x512xf32>
    %1 = arith.mulf %0, %0 : vector<8x512xf32>
    %cst = arith.constant dense<0.000000e+00> : vector<8xf32>
    %2 = vector.multi_reduction <add>, %1, %cst [1] : vector<8x512xf32> to vector<8xf32>
    %3 = vector.shape_cast %2 : vector<8xf32> to vector<8x1xf32>
    %4 = math.sqrt %3 : vector<8x1xf32>
    %cst_1 = arith.constant 9.99999996E-13 : f32
    %5 = vector.broadcast %cst_1 : f32 to vector<8x1xf32>
    %6 = arith.maximumf %4, %5 : vector<8x1xf32>
    %7 = vector.broadcast %6 : vector<8x1xf32> to vector<8x512xf32>
    %8 = arith.divf %0, %7 : vector<8x512xf32>
    %c0_2 = arith.constant 0 : index
    %c0_3 = arith.constant 0 : index
    %9 = vector.load %arg3[%c0_2, %c0_3] : memref<128x512xf32, #tpu.memory_space<vmem>>, vector<128x512xf32>
    %10 = arith.mulf %9, %9 : vector<128x512xf32>
    %cst_4 = arith.constant dense<0.000000e+00> : vector<128xf32>
    %11 = vector.multi_reduction <add>, %10, %cst_4 [1] : vector<128x512xf32> to vector<128xf32>
    %12 = vector.shape_cast %11 : vector<128xf32> to vector<128x1xf32>
    %13 = math.sqrt %12 : vector<128x1xf32>
    %cst_5 = arith.constant 9.99999996E-13 : f32
    %14 = vector.broadcast %cst_5 : f32 to vector<128x1xf32>
    %15 = arith.maximumf %13, %14 : vector<128x1xf32>
    %16 = vector.broadcast %15 : vector<128x1xf32> to vector<128x512xf32>
    %17 = arith.divf %9, %16 : vector<128x512xf32>
    %18 = arith.truncf %8 : vector<8x512xf32> to vector<8x512xbf16>
    %19 = arith.truncf %17 : vector<128x512xf32> to vector<128x512xbf16>
    %cst_6 = arith.constant dense<0.000000e+00> : vector<8x128xf32>
    %20 = tpu.matmul %18, %19, %cst_6 {dimension_numbers = #tpu.dot_dimension_numbers<[1], [1], [0], [0], [0, 0, 1, 0], [], []>} : vector<8x512xbf16>, vector<128x512xbf16>, vector<8x128xf32> -> vector<8x128xf32>
    %21 = arith.mulf %20, %20 : vector<8x128xf32>
    %cst_7 = arith.constant 1.000000e+00 : f32
    %22 = vector.broadcast %cst_7 : f32 to vector<8x128xf32>
    %23 = arith.subf %22, %21 : vector<8x128xf32>
    %cst_8 = arith.constant 0.000000e+00 : f32
    %cst_9 = arith.constant 1.000000e+00 : f32
    %24 = vector.broadcast %cst_8 : f32 to vector<8x128xf32>
    %25 = arith.maximumf %24, %23 : vector<8x128xf32>
    %26 = vector.broadcast %cst_9 : f32 to vector<8x128xf32>
    %27 = arith.minimumf %26, %25 : vector<8x128xf32>
    %28 = math.sqrt %27 : vector<8x128xf32>
    %cst_10 = arith.constant 0.87758255 : f32
    %29 = vector.broadcast %cst_10 : f32 to vector<8x128xf32>
    %30 = arith.mulf %20, %29 : vector<8x128xf32>
    %cst_11 = arith.constant 0.47942555 : f32
    %31 = vector.broadcast %cst_11 : f32 to vector<8x128xf32>
    %32 = arith.mulf %28, %31 : vector<8x128xf32>
    %33 = arith.subf %30, %32 : vector<8x128xf32>
    %cst_12 = arith.constant -0.87758255 : f32
    %34 = vector.broadcast %cst_12 : f32 to vector<8x128xf32>
    %35 = arith.cmpf ogt, %20, %34 : vector<8x128xf32>
    %cst_13 = arith.constant 0.239712775 : f32
    %36 = vector.broadcast %cst_13 : f32 to vector<8x128xf32>
    %37 = arith.subf %20, %36 : vector<8x128xf32>
    %38 = arith.select %35, %33, %37 : vector<8x128xi1>, vector<8x128xf32>
    %c128_i32 = arith.constant 128 : i32
    %39 = arith.muli %arg1, %c128_i32 : i32
    %40 = tpu.iota {dimensions = array<i32: 1>} : vector<8x128xi32>
    %41 = vector.broadcast %39 : i32 to vector<8x128xi32>
    %42 = arith.addi %41, %40 : vector<8x128xi32>
    %c0_14 = arith.constant 0 : index
    %c0_15 = arith.constant 0 : index
    %43 = vector.load %arg4[%c0_14, %c0_15] : memref<8x1xi32, #tpu.memory_space<vmem>>, vector<8x1xi32>
    %44 = vector.broadcast %43 : vector<8x1xi32> to vector<8x128xi32>
    %45 = arith.cmpi eq, %42, %44 : vector<8x128xi32>
    %46 = arith.select %45, %38, %20 : vector<8x128xi1>, vector<8x128xf32>
    %cst_16 = arith.constant 3.000000e+01 : f32
    %47 = vector.broadcast %cst_16 : f32 to vector<8x128xf32>
    %48 = arith.mulf %46, %47 : vector<8x128xf32>
    %c0_17 = arith.constant 0 : index
    %c0_18 = arith.constant 0 : index
    %49 = vector.load %arg5[%c0_17, %c0_18] : memref<8x128xf32, #tpu.memory_space<vmem>>, vector<8x128xf32>
    tpu.vector_store %arg5[%c0_17, %c0_18], %48 {strides = array<i32>} : memref<8x128xf32, #tpu.memory_space<vmem>>, vector<8x128xf32>,
    return
  }
  func.func @transform_0(%arg0: i32, %arg1: i32) -> (i32, i32) {
    %c0_i32 = arith.constant 0 : i32
    %c0_i32_0 = arith.constant 0 : i32
    return %arg0, %c0_i32 : i32, i32
  }
  func.func @transform_1(%arg0: i32, %arg1: i32) -> (i32, i32) {
    %c0_i32 = arith.constant 0 : i32
    %c0_i32_0 = arith.constant 0 : i32
    return %arg1, %c0_i32 : i32, i32
  }
  func.func @transform_2(%arg0: i32, %arg1: i32) -> (i32, i32) {
    %c0_i32 = arith.constant 0 : i32
    %c0_i32_0 = arith.constant 0 : i32
    return %arg0, %c0_i32 : i32, i32
  }
  func.func @transform_3(%arg0: i32, %arg1: i32) -> (i32, i32) {
    %c0_i32 = arith.constant 0 : i32
    return %arg0, %arg1 : i32, i32
  }
}

</mosaic_0001>

<llo_original>
// kernel: tpu_custom_call.1
$region0: #{tpu_custom_call.1}
  #allocation0 [shape = 'u32[]', space=smem, size = 0x4, offset = 0x4, fixed_abs, tag = 'smem constant byte address 0x4 - core index']
  #allocation1 [shape = 'u32[144,128]{1,0:T(1,128)}', space=vmem, size = 0x12000, scoped, tag = 'internal scratch']
  %s0 = inlined_call_operand.hbm [shape: f32[16,512], index: 0, kind: input, shape index: {}]
  %s1 = inlined_call_operand.hbm [shape: f32[256,512], index: 1, kind: input, shape index: {}]
  %s2 = inlined_call_operand.vmem [shape: s32[16,1], index: 2, kind: input, shape index: {}]
  %s3 = inlined_call_operand.hbm [shape: f32[16,256], index: 3, kind: output, shape index: {}]
  %s4 = sld [smem:[#allocation0]]
  $region53: #{tpu_custom_call.1} parent=0
    _
  %s6 = ssub.s32 1, %s4
  %s7 = scalar_select 0, %s6, %s4
  $region1: #{tpu_custom_call.1} parent=0
    #allocation2 [shape = 'u8[32768]{0}', space=vmem, size = 0x8000, scoped, tag = 'input window, operand 0']
    #allocation3 [shape = 's32[2]{0}', space=sflag, size = 0x8, scoped, tag = 'scoped memory for tpu_custom_call.1']
    #allocation4 [shape = 's32[2]{0}', space=sflag, size = 0x8, scoped, tag = 'scoped memory for tpu_custom_call.1']
    #allocation5 [shape = 'u8[524288]{0}', space=vmem, size = 0x80000, scoped, tag = 'input window, operand 1']
    #allocation6 [shape = 's32[2]{0}', space=sflag, size = 0x8, scoped, tag = 'scoped memory for tpu_custom_call.1']
    #allocation7 [shape = 'u8[8192]{0}', space=vmem, size = 0x2000, scoped, tag = 'output window, operand 0']
    %8 = vsyncpa [#allocation3], 0
    %s9 = scalar_lea.sflag [#allocation3], 1
    %10 = vsyncpa %s9, 0
    %11 = vsyncpa [#allocation6], 0
    %s12 = scalar_lea.sflag [#allocation6], 1
    %13 = vsyncpa %s12, 0
    %14 = vsyncpa [#allocation4], 0
    %s15 = scalar_lea.sflag [#allocation4], 1
    %16 = vsyncpa %s15, 0
    loop: start=0, step=1, limit=6
    $region2: #{tpu_custom_call.1} parent=1 // loop_pre_header
      _
    $region3: #{tpu_custom_call.1} parent=1 // loop_header
      %s18 = sphi 0, %s22
      %p19 = scmp.ge.s32.totalorder %s18, 6
      %s25 = sphi 0, %s37
      %s26 = sphi 0, %s33
      %s27 = sphi 0, %s25
      %s28 = sphi 0, %s26
      %s29 = sphi 0, %s27
      %s30 = sphi 0, %s28
      %s40 = sphi 0, %s42
      %s43 = sphi 0, %s40
      %s44 = sphi 0, %s43
      %s60 = sphi 0, %s44
      %s66 = sphi 0, %s68
      %s69 = sphi 0, %s66
      %s70 = sphi 0, %s69
      %s86 = sphi 0, %s70
      %s92 = sphi 0, %s94
      %s95 = sphi 0, %s92
      %s96 = sphi 0, %s95
      %s112 = sphi 0, %s96
      %s120 = sphi 0, %s122
      %s123 = sphi 0, %s120
      %s124 = sphi 0, %s123
      %s140 = sphi 0, %s124
    $region4: #{tpu_custom_call.1} parent=1 // loop_header_branch
      %21 = sbr.rel (%p19) target = $region8
    $region5: #{tpu_custom_call.1} parent=1 // loop_body
      %s23 = ssub.s32 %s18, 1
      %s24 = ssub.s32 %s18, 2
      %s31 = sadd.s32 1, %s26
      %p32 = scmp.ge.s32.totalorder %s31, 2
      %s33 = scalar_select %p32, 0, %s31
      %s34 = sadd.s32 1, %s25
      %s35 = scalar_select %p32, %s34, %s25
      %p36 = scmp.ge.s32.totalorder %s35, 2
      %s37 = scalar_select %p36, 0, %s35
      %s38 = ssub.s32 %s25, %s37
      %p39 = scmp.eq.s32.totalorder %s38, 0
      %s41 = sadd.s32 %s40, 1
      %s42 = scalar_select %p39, %s40, %s41
      %p45 = pneg %p39
      %p46 = scmp.eq.s32.totalorder %s18, 3
      %p47 = por %p45, %p46
      %p48 = scmp.ne.s32.totalorder %s40, %s43
      %p49 = scmp.eq.s32.totalorder %s18, 0
      %p50 = por %p48, %p49
      %p51 = scmp.ne.s32.totalorder %s40, %s43
      %p52 = scmp.eq.s32.totalorder %s23, 3
      %p53 = por %p51, %p52
      %p54 = scmp.ne.s32.totalorder %s43, %s44
      %p55 = scmp.eq.s32.totalorder %s23, 0
      %p56 = por %p54, %p55
      %p57 = scmp.ne.s32.totalorder %s43, %s44
      %p58 = scmp.eq.s32.totalorder %s24, 3
      %p59 = por %p57, %p58
      %p61 = scmp.ne.s32.totalorder %s44, %s60
      %p62 = scmp.eq.s32.totalorder %s24, 0
      %p63 = por %p61, %p62
      %s64 = ssub.s32 %s26, %s33
      %p65 = scmp.eq.s32.totalorder %s64, 0
      %s67 = sadd.s32 %s66, 1
      %s68 = scalar_select %p65, %s66, %s67
      %p71 = pneg %p65
      %p72 = scmp.eq.s32.totalorder %s18, 3
      %p73 = por %p71, %p72
      %p74 = scmp.ne.s32.totalorder %s66, %s69
      %p75 = scmp.eq.s32.totalorder %s18, 0
      %p76 = por %p74, %p75
      %p77 = scmp.ne.s32.totalorder %s66, %s69
      %p78 = scmp.eq.s32.totalorder %s23, 3
      %p79 = por %p77, %p78
      %p80 = scmp.ne.s32.totalorder %s69, %s70
      %p81 = scmp.eq.s32.totalorder %s23, 0
      %p82 = por %p80, %p81
      %p83 = scmp.ne.s32.totalorder %s69, %s70
      %p84 = scmp.eq.s32.totalorder %s24, 3
      %p85 = por %p83, %p84
      %p87 = scmp.ne.s32.totalorder %s70, %s86
      %p88 = scmp.eq.s32.totalorder %s24, 0
      %p89 = por %p87, %p88
      %s90 = ssub.s32 %s25, %s37
      %p91 = scmp.eq.s32.totalorder %s90, 0
      %s93 = sadd.s32 %s92, 1
      %s94 = scalar_select %p91, %s92, %s93
      %p97 = pneg %p91
      %p98 = scmp.eq.s32.totalorder %s18, 3
      %p99 = por %p97, %p98
      %p100 = scmp.ne.s32.totalorder %s92, %s95
      %p101 = scmp.eq.s32.totalorder %s18, 0
      %p102 = por %p100, %p101
      %p103 = scmp.ne.s32.totalorder %s92, %s95
      %p104 = scmp.eq.s32.totalorder %s23, 3
      %p105 = por %p103, %p104
      %p106 = scmp.ne.s32.totalorder %s95, %s96
      %p107 = scmp.eq.s32.totalorder %s23, 0
      %p108 = por %p106, %p107
      %p109 = scmp.ne.s32.totalorder %s95, %s96
      %p110 = scmp.eq.s32.totalorder %s24, 3
      %p111 = por %p109, %p110
      %p113 = scmp.ne.s32.totalorder %s96, %s112
      %p114 = scmp.eq.s32.totalorder %s24, 0
      %p115 = por %p113, %p114
      %s116 = ssub.s32 %s25, %s37
      %s117 = ssub.s32 %s26, %s33
      %s118 = sor.u32 %s116, %s117
      %p119 = scmp.eq.s32.totalorder %s118, 0
      %s121 = sadd.s32 %s120, 1
      %s122 = scalar_select %p119, %s120, %s121
      %p125 = pneg %p119
      %p126 = scmp.eq.s32.totalorder %s18, 3
      %p127 = por %p125, %p126
      %p128 = scmp.ne.s32.totalorder %s120, %s123
      %p129 = scmp.eq.s32.totalorder %s18, 0
      %p130 = por %p128, %p129
      %p131 = scmp.ne.s32.totalorder %s120, %s123
      %p132 = scmp.eq.s32.totalorder %s23, 3
      %p133 = por %p131, %p132
      %p134 = scmp.ne.s32.totalorder %s123, %s124
      %p135 = scmp.eq.s32.totalorder %s23, 0
      %p136 = por %p134, %p135
      %p137 = scmp.ne.s32.totalorder %s123, %s124
      %p138 = scmp.eq.s32.totalorder %s24, 3
      %p139 = por %p137, %p138
      %p141 = scmp.ne.s32.totalorder %s124, %s140
      %p142 = scmp.eq.s32.totalorder %s24, 0
      %p143 = por %p141, %p142
      %p144 = scmp.le.s32.totalorder 1, %s18
      %p145 = scmp.lt.s32.totalorder %s18, 5
      %p146 = pnand %p144, %p145
      %p147 = pneg %p146
      // Predicated region
      $region9: #{tpu_custom_call.1} parent=5 // pred_check
        _
      $region10: #{tpu_custom_call.1} parent=5 // pred_check_branch
        %149 = sbr.rel (%p146) target = $region12
      $region11: #{tpu_custom_call.1} parent=5 // pred_region
        %s150 = ssub.s32 %s18, 1
      $region12: #{tpu_custom_call.1} parent=5 // pred_fallthru
        _
      %p151 = scmp.lt.s32.totalorder %s18, 4
      // Predicated region
      $region13: #{tpu_custom_call.1} parent=5 // pred_check
        %p152 = pneg %p151
      $region14: #{tpu_custom_call.1} parent=5 // pred_check_branch
        %154 = sbr.rel (%p152) target = $region16
      $region15: #{tpu_custom_call.1} parent=5 // pred_region
        // Predicated region
        $region17: #{tpu_custom_call.1} parent=15 // pred_check
          %p155 = pneg %p50
        $region18: #{tpu_custom_call.1} parent=15 // pred_check_branch
          %157 = sbr.rel (%p155) target = $region20
        $region19: #{tpu_custom_call.1} parent=15 // pred_region
          %s158 = sand.u32 %s40, 1
          %s159 = scalar_lea.sflag [#allocation3], %s158
          %s160 = sand.u32 %s40, 1
          %s161 = smul.addr %s160, 32
          %s162 = scalar_lea.vmem [#allocation2], %s161
          %s164 = ssub.s32 512, 512
          %165 = vsyncadd %s159, %s164
          %s166 = smul.addr %s25, 4
          %s167 = smul.addr %s166, 128
          %s168 = scalar_lea.hbm %s0, %s167
          %s170 = sshll.u32 %s162, 4
          %s171 = int_to_ptr.vmem [resolvable:$true] %s170
          %173 = dma.hbm_to_vmem [thread:$0]  %s168, 512, %s171, %s159
        $region20: #{tpu_custom_call.1} parent=15 // pred_fallthru
          _
        // Predicated region
        $region21: #{tpu_custom_call.1} parent=15 // pred_check
          %p174 = pneg %p76
        $region22: #{tpu_custom_call.1} parent=15 // pred_check_branch
          %176 = sbr.rel (%p174) target = $region24
        $region23: #{tpu_custom_call.1} parent=15 // pred_region
          %s177 = sand.u32 %s66, 1
          %s178 = scalar_lea.sflag [#allocation6], %s177
          %s179 = sand.u32 %s66, 1
          %s180 = smul.addr %s179, 512
          %s181 = scalar_lea.vmem [#allocation5], %s180
          %s182 = smul.u32 16, %s26
          %s184 = ssub.s32 8192, 8192
          %185 = vsyncadd %s178, %s184
          %s186 = smul.addr %s182, 4
          %s187 = smul.addr %s186, 128
          %s188 = scalar_lea.hbm %s1, %s187
          %s189 = sshll.u32 %s181, 4
          %s190 = int_to_ptr.vmem [resolvable:$true] %s189
          %195 = dma.hbm_to_vmem [thread:$0]  %s188, 8192, %s190, %s178, 512, 512, 32
        $region24: #{tpu_custom_call.1} parent=15 // pred_fallthru
          _
        // Predicated region
        $region25: #{tpu_custom_call.1} parent=15 // pred_check
          %p196 = pneg %p102
        $region26: #{tpu_custom_call.1} parent=15 // pred_check_branch
          %198 = sbr.rel (%p196) target = $region28
        $region27: #{tpu_custom_call.1} parent=15 // pred_region
          %p199 = scmp.lt.s32.totalorder %s25, 1
          %s200 = scalar_select %p199, %s25, 1
          %s201 = smul.addr %s200, 8
          %s202 = scalar_lea.vmem %s2, %s201
        $region28: #{tpu_custom_call.1} parent=15 // pred_fallthru
          _
      $region16: #{tpu_custom_call.1} parent=5 // pred_fallthru
        _
      %p203 = scmp.le.s32.totalorder 1, %s18
      %p204 = scmp.lt.s32.totalorder %s18, 5
      %p205 = pnand %p203, %p204
      %p206 = pneg %p205
      // Predicated region
      $region29: #{tpu_custom_call.1} parent=5 // pred_check
        _
      $region30: #{tpu_custom_call.1} parent=5 // pred_check_branch
        %208 = sbr.rel (%p205) target = $region32
      $region31: #{tpu_custom_call.1} parent=5 // pred_region
        %s209 = ssub.s32 %s18, 1
        %s210 = sand.u32 %s43, 1
        %s211 = scalar_lea.sflag [#allocation3], %s210
        %s212 = sand.u32 %s43, 1
        %s213 = smul.addr %s212, 32
        %s214 = scalar_lea.vmem [#allocation2], %s213
        // Predicated region
        $region33: #{tpu_custom_call.1} parent=31 // pred_check
          %p215 = pneg %p56
        $region34: #{tpu_custom_call.1} parent=31 // pred_check_branch
          %217 = sbr.rel (%p215) target = $region36
        $region35: #{tpu_custom_call.1} parent=31 // pred_region
          %218 = dma.done %s211, 512
        $region36: #{tpu_custom_call.1} parent=31 // pred_fallthru
          _
        %s219 = sand.u32 %s69, 1
        %s220 = scalar_lea.sflag [#allocation6], %s219
        %s221 = sand.u32 %s69, 1
        %s222 = smul.addr %s221, 512
        %s223 = scalar_lea.vmem [#allocation5], %s222
        // Predicated region
        $region37: #{tpu_custom_call.1} parent=31 // pred_check
          %p224 = pneg %p82
        $region38: #{tpu_custom_call.1} parent=31 // pred_check_branch
          %226 = sbr.rel (%p224) target = $region40
        $region39: #{tpu_custom_call.1} parent=31 // pred_region
          %227 = dma.done %s220, 8192
        $region40: #{tpu_custom_call.1} parent=31 // pred_fallthru
          _
        %s228 = sand.u32 %s43, 1
        %s229 = scalar_lea.sflag [#allocation3], %s228
        %s230 = sand.u32 %s43, 1
        %s231 = smul.addr %s230, 32
        %s232 = scalar_lea.vmem [#allocation2], %s231
        %p233 = pneg %p56
        %p234 = pneg %p53
        %s235 = sand.u32 %s69, 1
        %s236 = scalar_lea.sflag [#allocation6], %s235
        %s237 = sand.u32 %s69, 1
        %s238 = smul.addr %s237, 512
        %s239 = scalar_lea.vmem [#allocation5], %s238
        %p240 = pneg %p82
        %p241 = pneg %p79
        %p242 = scmp.lt.s32.totalorder %s27, 1
        %s243 = scalar_select %p242, %s27, 1
        %s244 = smul.addr %s243, 8
        %s245 = scalar_lea.vmem %s2, %s244
        %p246 = pneg %p108
        %p247 = pneg %p105
        %p248 = pneg %p136
        %p249 = pneg %p133
        %s250 = sand.u32 %s123, 1
        %s251 = scalar_lea.sflag [#allocation4], %s250
        %s252 = sand.u32 %s123, 1
        %s253 = smul.addr %s252, 8
        %s254 = scalar_lea.vmem [#allocation7], %s253
        %s255 = smul.u32 16, %s28
        %p256 = scmp.lt.s32.totalorder %s27, 1
        %s257 = scalar_select %p256, %s27, 1
        %s258 = smul.addr %s257, 8
        %s259 = scalar_lea.vmem %s2, %s258
        %v261 = vld [vmem:[%s214] sm:$0xff]
        %v262 = vld [vmem:[%s214 + $0x8] sm:$0xff]
        %v263 = vld [vmem:[%s214 + $0x10] sm:$0xff]
        %v264 = vld [vmem:[%s214 + $0x18] sm:$0xff]
        %v265 = vmul.f32 %v261, %v261
        %v266 = vmul.f32 %v262, %v262
        %v267 = vmul.f32 %v263, %v263
        %v268 = vmul.f32 %v264, %v264
        %v269 = vadd.f32 %v265, %v266
        %v270 = vadd.f32 %v269, %v267
        %v271 = vadd.f32 %v270, %v268
        %272 = vadd.xlane.f32.xlu0 %v271
        %v273 = vpop.xlane.xlu0 %272
        %v274 = vrsqrt.pop %v273
        %v275 = vmul.f32 %v273, %v274
        %vm276 = vcmp.eq.f32.partialorder %v273, inf
        %v277 = vsel %vm276, %v273, %v275
        %vm278 = vcmp.eq.f32.partialorder %v273, 0.0
        %v279 = vand.u32 %v273, 2147483648
        %v280 = vsel %vm278, %v279, %v277
        %v281 = vmax.f32 %v280, 1e-12
        %v282 = vrcp.pop %v281
        %v283 = vmul.f32 %v261, %v282
        %v284 = vmul.f32 %v262, %v282
        %v285 = vmul.f32 %v263, %v282
        %v286 = vmul.f32 %v264, %v282
        %v287 = vld [vmem:[%s223] sm:$0xff]
        %v288 = vld [vmem:[%s223 + $0x8] sm:$0xff]
        %v289 = vld [vmem:[%s223 + $0x10] sm:$0xff]
        %v290 = vld [vmem:[%s223 + $0x18] sm:$0xff]
        %v291 = vld [vmem:[%s223 + $0x20] sm:$0xff]
        %v292 = vld [vmem:[%s223 + $0x28] sm:$0xff]
        %v293 = vld [vmem:[%s223 + $0x30] sm:$0xff]
        %v294 = vld [vmem:[%s223 + $0x38] sm:$0xff]
        %v295 = vld [vmem:[%s223 + $0x40] sm:$0xff]
        %v296 = vld [vmem:[%s223 + $0x48] sm:$0xff]
        %v297 = vld [vmem:[%s223 + $0x50] sm:$0xff]
        %v298 = vld [vmem:[%s223 + $0x58] sm:$0xff]
        %v299 = vld [vmem:[%s223 + $0x60] sm:$0xff]
        %v300 = vld [vmem:[%s223 + $0x68] sm:$0xff]
        %v301 = vld [vmem:[%s223 + $0x70] sm:$0xff]
        %v302 = vld [vmem:[%s223 + $0x78] sm:$0xff]
        %v303 = vld [vmem:[%s223 + $0x80] sm:$0xff]
        %v304 = vld [vmem:[%s223 + $0x88] sm:$0xff]
        %v305 = vld [vmem:[%s223 + $0x90] sm:$0xff]
        %v306 = vld [vmem:[%s223 + $0x98] sm:$0xff]
        %v307 = vld [vmem:[%s223 + $0xa0] sm:$0xff]
        %v308 = vld [vmem:[%s223 + $0xa8] sm:$0xff]
        %v309 = vld [vmem:[%s223 + $0xb0] sm:$0xff]
        %v310 = vld [vmem:[%s223 + $0xb8] sm:$0xff]
        %v311 = vld [vmem:[%s223 + $0xc0] sm:$0xff]
        %v312 = vld [vmem:[%s223 + $0xc8] sm:$0xff]
        %v313 = vld [vmem:[%s223 + $0xd0] sm:$0xff]
        %v314 = vld [vmem:[%s223 + $0xd8] sm:$0xff]
        %v315 = vld [vmem:[%s223 + $0xe0] sm:$0xff]
        %v316 = vld [vmem:[%s223 + $0xe8] sm:$0xff]
        %v317 = vld [vmem:[%s223 + $0xf0] sm:$0xff]
        %v318 = vld [vmem:[%s223 + $0xf8] sm:$0xff]
        %v319 = vld [vmem:[%s223 + $0x100] sm:$0xff]
        %v320 = vld [vmem:[%s223 + $0x108] sm:$0xff]
        %v321 = vld [vmem:[%s223 + $0x110] sm:$0xff]
        %v322 = vld [vmem:[%s223 + $0x118] sm:$0xff]
        %v323 = vld [vmem:[%s223 + $0x120] sm:$0xff]
        %v324 = vld [vmem:[%s223 + $0x128] sm:$0xff]
        %v325 = vld [vmem:[%s223 + $0x130] sm:$0xff]
        %v326 = vld [vmem:[%s223 + $0x138] sm:$0xff]
        %v327 = vld [vmem:[%s223 + $0x140] sm:$0xff]
        %v328 = vld [vmem:[%s223 + $0x148] sm:$0xff]
        %v329 = vld [vmem:[%s223 + $0x150] sm:$0xff]
        %v330 = vld [vmem:[%s223 + $0x158] sm:$0xff]
        %v331 = vld [vmem:[%s223 + $0x160] sm:$0xff]
        %v332 = vld [vmem:[%s223 + $0x168] sm:$0xff]
        %v333 = vld [vmem:[%s223 + $0x170] sm:$0xff]
        %v334 = vld [vmem:[%s223 + $0x178] sm:$0xff]
        %v335 = vld [vmem:[%s223 + $0x180] sm:$0xff]
        %v336 = vld [vmem:[%s223 + $0x188] sm:$0xff]
        %v337 = vld [vmem:[%s223 + $0x190] sm:$0xff]
        %v338 = vld [vmem:[%s223 + $0x198] sm:$0xff]
        %v339 = vld [vmem:[%s223 + $0x1a0] sm:$0xff]
        %v340 = vld [vmem:[%s223 + $0x1a8] sm:$0xff]
        %v341 = vld [vmem:[%s223 + $0x1b0] sm:$0xff]
        %v342 = vld [vmem:[%s223 + $0x1b8] sm:$0xff]
        %v343 = vld [vmem:[%s223 + $0x1c0] sm:$0xff]
        %v344 = vld [vmem:[%s223 + $0x1c8] sm:$0xff]
        %v345 = vld [vmem:[%s223 + $0x1d0] sm:$0xff]
        %v346 = vld [vmem:[%s223 + $0x1d8] sm:$0xff]
        %v347 = vld [vmem:[%s223 + $0x1e0] sm:$0xff]
        %v348 = vld [vmem:[%s223 + $0x1e8] sm:$0xff]
        %v349 = vld [vmem:[%s223 + $0x1f0] sm:$0xff]
        %v350 = vld [vmem:[%s223 + $0x1f8] sm:$0xff]
        %v351 = vmul.f32 %v287, %v287
        %v352 = vmul.f32 %v288, %v288
        %v353 = vmul.f32 %v289, %v289
        %v354 = vmul.f32 %v290, %v290
        %v355 = vmul.f32 %v291, %v291
        %v356 = vmul.f32 %v292, %v292
        %v357 = vmul.f32 %v293, %v293
        %v358 = vmul.f32 %v294, %v294
        %v359 = vmul.f32 %v295, %v295
        %v360 = vmul.f32 %v296, %v296
        %v361 = vmul.f32 %v297, %v297
        %v362 = vmul.f32 %v298, %v298
        %v363 = vmul.f32 %v299, %v299
        %v364 = vmul.f32 %v300, %v300
        %v365 = vmul.f32 %v301, %v301
        %v366 = vmul.f32 %v302, %v302
        %v367 = vmul.f32 %v303, %v303
        %v368 = vmul.f32 %v304, %v304
        %v369 = vmul.f32 %v305, %v305
        %v370 = vmul.f32 %v306, %v306
        %v371 = vmul.f32 %v307, %v307
        %v372 = vmul.f32 %v308, %v308
        %v373 = vmul.f32 %v309, %v309
        %v374 = vmul.f32 %v310, %v310
        %v375 = vmul.f32 %v311, %v311
        %v376 = vmul.f32 %v312, %v312
        %v377 = vmul.f32 %v313, %v313
        %v378 = vmul.f32 %v314, %v314
        %v379 = vmul.f32 %v315, %v315
        %v380 = vmul.f32 %v316, %v316
        %v381 = vmul.f32 %v317, %v317
        %v382 = vmul.f32 %v318, %v318
        %v383 = vmul.f32 %v319, %v319
        %v384 = vmul.f32 %v320, %v320
        %v385 = vmul.f32 %v321, %v321
        %v386 = vmul.f32 %v322, %v322
        %v387 = vmul.f32 %v323, %v323
        %v388 = vmul.f32 %v324, %v324
        %v389 = vmul.f32 %v325, %v325
        %v390 = vmul.f32 %v326, %v326
        %v391 = vmul.f32 %v327, %v327
        %v392 = vmul.f32 %v328, %v328
        %v393 = vmul.f32 %v329, %v329
        %v394 = vmul.f32 %v330, %v330
        %v395 = vmul.f32 %v331, %v331
        %v396 = vmul.f32 %v332, %v332
        %v397 = vmul.f32 %v333, %v333
        %v398 = vmul.f32 %v334, %v334
        %v399 = vmul.f32 %v335, %v335
        %v400 = vmul.f32 %v336, %v336
        %v401 = vmul.f32 %v337, %v337
        %v402 = vmul.f32 %v338, %v338
        %v403 = vmul.f32 %v339, %v339
        %v404 = vmul.f32 %v340, %v340
        %v405 = vmul.f32 %v341, %v341
        %v406 = vmul.f32 %v342, %v342
        %v407 = vmul.f32 %v343, %v343
        %v408 = vmul.f32 %v344, %v344
        %v409 = vmul.f32 %v345, %v345
        %v410 = vmul.f32 %v346, %v346
        %v411 = vmul.f32 %v347, %v347
        %v412 = vmul.f32 %v348, %v348
        %v413 = vmul.f32 %v349, %v349
        %v414 = vmul.f32 %v350, %v350
        %v415 = vadd.f32 %v351, %v352
        %v416 = vadd.f32 %v415, %v353
        %v417 = vadd.f32 %v416, %v354
        %418 = vadd.xlane.f32.xlu0 %v417
        %v419 = vpop.xlane.xlu0 %418
        %v420 = vadd.f32 %v355, %v356
        %v421 = vadd.f32 %v420, %v357
        %v422 = vadd.f32 %v421, %v358
        %423 = vadd.xlane.f32.xlu0 %v422
        %v424 = vpop.xlane.xlu0 %423
        %v425 = vadd.f32 %v359, %v360
        %v426 = vadd.f32 %v425, %v361
        %v427 = vadd.f32 %v426, %v362
        %428 = vadd.xlane.f32.xlu0 %v427
        %v429 = vpop.xlane.xlu0 %428
        %v430 = vadd.f32 %v363, %v364
        %v431 = vadd.f32 %v430, %v365
        %v432 = vadd.f32 %v431, %v366
        %433 = vadd.xlane.f32.xlu0 %v432
        %v434 = vpop.xlane.xlu0 %433
        %v435 = vadd.f32 %v367, %v368
        %v436 = vadd.f32 %v435, %v369
        %v437 = vadd.f32 %v436, %v370
        %438 = vadd.xlane.f32.xlu0 %v437
        %v439 = vpop.xlane.xlu0 %438
        %v440 = vadd.f32 %v371, %v372
        %v441 = vadd.f32 %v440, %v373
        %v442 = vadd.f32 %v441, %v374
        %443 = vadd.xlane.f32.xlu0 %v442
        %v444 = vpop.xlane.xlu0 %443
        %v445 = vadd.f32 %v375, %v376
        %v446 = vadd.f32 %v445, %v377
        %v447 = vadd.f32 %v446, %v378
        %448 = vadd.xlane.f32.xlu0 %v447
        %v449 = vpop.xlane.xlu0 %448
        %v450 = vadd.f32 %v379, %v380
        %v451 = vadd.f32 %v450, %v381
        %v452 = vadd.f32 %v451, %v382
        %453 = vadd.xlane.f32.xlu0 %v452
        %v454 = vpop.xlane.xlu0 %453
        %v455 = vadd.f32 %v383, %v384
        %v456 = vadd.f32 %v455, %v385
        %v457 = vadd.f32 %v456, %v386
        %458 = vadd.xlane.f32.xlu0 %v457
        %v459 = vpop.xlane.xlu0 %458
        %v460 = vadd.f32 %v387, %v388
        %v461 = vadd.f32 %v460, %v389
        %v462 = vadd.f32 %v461, %v390
        %463 = vadd.xlane.f32.xlu0 %v462
        %v464 = vpop.xlane.xlu0 %463
        %v465 = vadd.f32 %v391, %v392
        %v466 = vadd.f32 %v465, %v393
        %v467 = vadd.f32 %v466, %v394
        %468 = vadd.xlane.f32.xlu0 %v467
        %v469 = vpop.xlane.xlu0 %468
        %v470 = vadd.f32 %v395, %v396
        %v471 = vadd.f32 %v470, %v397
        %v472 = vadd.f32 %v471, %v398
        %473 = vadd.xlane.f32.xlu0 %v472
        %v474 = vpop.xlane.xlu0 %473
        %v475 = vadd.f32 %v399, %v400
        %v476 = vadd.f32 %v475, %v401
        %v477 = vadd.f32 %v476, %v402
        %478 = vadd.xlane.f32.xlu0 %v477
        %v479 = vpop.xlane.xlu0 %478
        %v480 = vadd.f32 %v403, %v404
        %v481 = vadd.f32 %v480, %v405
        %v482 = vadd.f32 %v481, %v406
        %483 = vadd.xlane.f32.xlu0 %v482
        %v484 = vpop.xlane.xlu0 %483
        %v485 = vadd.f32 %v407, %v408
        %v486 = vadd.f32 %v485, %v409
        %v487 = vadd.f32 %v486, %v410
        %488 = vadd.xlane.f32.xlu0 %v487
        %v489 = vpop.xlane.xlu0 %488
        %v490 = vadd.f32 %v411, %v412
        %v491 = vadd.f32 %v490, %v413
        %v492 = vadd.f32 %v491, %v414
        %493 = vadd.xlane.f32.xlu0 %v492
        %v494 = vpop.xlane.xlu0 %493
        %v495 = vrsqrt.pop %v419
        %v496 = vmul.f32 %v419, %v495
        %vm497 = vcmp.eq.f32.partialorder %v419, inf
        %v498 = vsel %vm497, %v419, %v496
        %vm499 = vcmp.eq.f32.partialorder %v419, 0.0
        %v500 = vand.u32 %v419, 2147483648
        %v501 = vsel %vm499, %v500, %v498
        %v502 = vrsqrt.pop %v424
        %v503 = vmul.f32 %v424, %v502
        %vm504 = vcmp.eq.f32.partialorder %v424, inf
        %v505 = vsel %vm504, %v424, %v503
        %vm506 = vcmp.eq.f32.partialorder %v424, 0.0
        %v507 = vand.u32 %v424, 2147483648
        %v508 = vsel %vm506, %v507, %v505
        %v509 = vrsqrt.pop %v429
        %v510 = vmul.f32 %v429, %v509
        %vm511 = vcmp.eq.f32.partialorder %v429, inf
        %v512 = vsel %vm511, %v429, %v510
        %vm513 = vcmp.eq.f32.partialorder %v429, 0.0
        %v514 = vand.u32 %v429, 2147483648
        %v515 = vsel %vm513, %v514, %v512
        %v516 = vrsqrt.pop %v434
        %v517 = vmul.f32 %v434, %v516
        %vm518 = vcmp.eq.f32.partialorder %v434, inf
        %v519 = vsel %vm518, %v434, %v517
        %vm520 = vcmp.eq.f32.partialorder %v434, 0.0
        %v521 = vand.u32 %v434, 2147483648
        %v522 = vsel %vm520, %v521, %v519
        %v523 = vrsqrt.pop %v439
        %v524 = vmul.f32 %v439, %v523
        %vm525 = vcmp.eq.f32.partialorder %v439, inf
        %v526 = vsel %vm525, %v439, %v524
        %vm527 = vcmp.eq.f32.partialorder %v439, 0.0
        %v528 = vand.u32 %v439, 2147483648
        %v529 = vsel %vm527, %v528, %v526
        %v530 = vrsqrt.pop %v444
        %v531 = vmul.f32 %v444, %v530
        %vm532 = vcmp.eq.f32.partialorder %v444, inf
        %v533 = vsel %vm532, %v444, %v531
        %vm534 = vcmp.eq.f32.partialorder %v444, 0.0
        %v535 = vand.u32 %v444, 2147483648
        %v536 = vsel %vm534, %v535, %v533
        %v537 = vrsqrt.pop %v449
        %v538 = vmul.f32 %v449, %v537
        %vm539 = vcmp.eq.f32.partialorder %v449, inf
        %v540 = vsel %vm539, %v449, %v538
        %vm541 = vcmp.eq.f32.partialorder %v449, 0.0
        %v542 = vand.u32 %v449, 2147483648
        %v543 = vsel %vm541, %v542, %v540
        %v544 = vrsqrt.pop %v454
        %v545 = vmul.f32 %v454, %v544
        %vm546 = vcmp.eq.f32.partialorder %v454, inf
        %v547 = vsel %vm546, %v454, %v545
        %vm548 = vcmp.eq.f32.partialorder %v454, 0.0
        %v549 = vand.u32 %v454, 2147483648
        %v550 = vsel %vm548, %v549, %v547
        %v551 = vrsqrt.pop %v459
        %v552 = vmul.f32 %v459, %v551
        %vm553 = vcmp.eq.f32.partialorder %v459, inf
        %v554 = vsel %vm553, %v459, %v552
        %vm555 = vcmp.eq.f32.partialorder %v459, 0.0
        %v556 = vand.u32 %v459, 2147483648
        %v557 = vsel %vm555, %v556, %v554
        %v558 = vrsqrt.pop %v464
        %v559 = vmul.f32 %v464, %v558
        %vm560 = vcmp.eq.f32.partialorder %v464, inf
        %v561 = vsel %vm560, %v464, %v559
        %vm562 = vcmp.eq.f32.partialorder %v464, 0.0
        %v563 = vand.u32 %v464, 2147483648
        %v564 = vsel %vm562, %v563, %v561
        %v565 = vrsqrt.pop %v469
        %v566 = vmul.f32 %v469, %v565
        %vm567 = vcmp.eq.f32.partialorder %v469, inf
        %v568 = vsel %vm567, %v469, %v566
        %vm569 = vcmp.eq.f32.partialorder %v469, 0.0
        %v570 = vand.u32 %v469, 2147483648
        %v571 = vsel %vm569, %v570, %v568
        %v572 = vrsqrt.pop %v474
        %v573 = vmul.f32 %v474, %v572
        %vm574 = vcmp.eq.f32.partialorder %v474, inf
        %v575 = vsel %vm574, %v474, %v573
        %vm576 = vcmp.eq.f32.partialorder %v474, 0.0
        %v577 = vand.u32 %v474, 2147483648
        %v578 = vsel %vm576, %v577, %v575
        %v579 = vrsqrt.pop %v479
        %v580 = vmul.f32 %v479, %v579
        %vm581 = vcmp.eq.f32.partialorder %v479, inf
        %v582 = vsel %vm581, %v479, %v580
        %vm583 = vcmp.eq.f32.partialorder %v479, 0.0
        %v584 = vand.u32 %v479, 2147483648
        %v585 = vsel %vm583, %v584, %v582
        %v586 = vrsqrt.pop %v484
        %v587 = vmul.f32 %v484, %v586
        %vm588 = vcmp.eq.f32.partialorder %v484, inf
        %v589 = vsel %vm588, %v484, %v587
        %vm590 = vcmp.eq.f32.partialorder %v484, 0.0
        %v591 = vand.u32 %v484, 2147483648
        %v592 = vsel %vm590, %v591, %v589
        %v593 = vrsqrt.pop %v489
        %v594 = vmul.f32 %v489, %v593
        %vm595 = vcmp.eq.f32.partialorder %v489, inf
        %v596 = vsel %vm595, %v489, %v594
        %vm597 = vcmp.eq.f32.partialorder %v489, 0.0
        %v598 = vand.u32 %v489, 2147483648
        %v599 = vsel %vm597, %v598, %v596
        %v600 = vrsqrt.pop %v494
        %v601 = vmul.f32 %v494, %v600
        %vm602 = vcmp.eq.f32.partialorder %v494, inf
        %v603 = vsel %vm602, %v494, %v601
        %vm604 = vcmp.eq.f32.partialorder %v494, 0.0
        %v605 = vand.u32 %v494, 2147483648
        %v606 = vsel %vm604, %v605, %v603
        %v607 = vmax.f32 %v501, 1e-12
        %v608 = vmax.f32 %v508, 1e-12
        %v609 = vmax.f32 %v515, 1e-12
        %v610 = vmax.f32 %v522, 1e-12
        %v611 = vmax.f32 %v529, 1e-12
        %v612 = vmax.f32 %v536, 1e-12
        %v613 = vmax.f32 %v543, 1e-12
        %v614 = vmax.f32 %v550, 1e-12
        %v615 = vmax.f32 %v557, 1e-12
        %v616 = vmax.f32 %v564, 1e-12
        %v617 = vmax.f32 %v571, 1e-12
        %v618 = vmax.f32 %v578, 1e-12
        %v619 = vmax.f32 %v585, 1e-12
        %v620 = vmax.f32 %v592, 1e-12
        %v621 = vmax.f32 %v599, 1e-12
        %v622 = vmax.f32 %v606, 1e-12
        %v623 = vrcp.pop %v607
        %v624 = vmul.f32 %v287, %v623
        %v625 = vmul.f32 %v288, %v623
        %v626 = vmul.f32 %v289, %v623
        %v627 = vmul.f32 %v290, %v623
        %v628 = vrcp.pop %v608
        %v629 = vmul.f32 %v291, %v628
        %v630 = vmul.f32 %v292, %v628
        %v631 = vmul.f32 %v293, %v628
        %v632 = vmul.f32 %v294, %v628
        %v633 = vrcp.pop %v609
        %v634 = vmul.f32 %v295, %v633
        %v635 = vmul.f32 %v296, %v633
        %v636 = vmul.f32 %v297, %v633
        %v637 = vmul.f32 %v298, %v633
        %v638 = vrcp.pop %v610
        %v639 = vmul.f32 %v299, %v638
        %v640 = vmul.f32 %v300, %v638
        %v641 = vmul.f32 %v301, %v638
        %v642 = vmul.f32 %v302, %v638
        %v643 = vrcp.pop %v611
        %v644 = vmul.f32 %v303, %v643
        %v645 = vmul.f32 %v304, %v643
        %v646 = vmul.f32 %v305, %v643
        %v647 = vmul.f32 %v306, %v643
        %v648 = vrcp.pop %v612
        %v649 = vmul.f32 %v307, %v648
        %v650 = vmul.f32 %v308, %v648
        %v651 = vmul.f32 %v309, %v648
        %v652 = vmul.f32 %v310, %v648
        %v653 = vrcp.pop %v613
        %v654 = vmul.f32 %v311, %v653
        %v655 = vmul.f32 %v312, %v653
        %v656 = vmul.f32 %v313, %v653
        %v657 = vmul.f32 %v314, %v653
        %v658 = vrcp.pop %v614
        %v659 = vmul.f32 %v315, %v658
        %v660 = vmul.f32 %v316, %v658
        %v661 = vmul.f32 %v317, %v658
        %v662 = vmul.f32 %v318, %v658
        %v663 = vrcp.pop %v615
        %v664 = vmul.f32 %v319, %v663
        %v665 = vmul.f32 %v320, %v663
        %v666 = vmul.f32 %v321, %v663
        %v667 = vmul.f32 %v322, %v663
        %v668 = vrcp.pop %v616
        %v669 = vmul.f32 %v323, %v668
        %v670 = vmul.f32 %v324, %v668
        %v671 = vmul.f32 %v325, %v668
        %v672 = vmul.f32 %v326, %v668
        %v673 = vrcp.pop %v617
        %v674 = vmul.f32 %v327, %v673
        %v675 = vmul.f32 %v328, %v673
        %v676 = vmul.f32 %v329, %v673
        %v677 = vmul.f32 %v330, %v673
        %v678 = vrcp.pop %v618
        %v679 = vmul.f32 %v331, %v678
        %v680 = vmul.f32 %v332, %v678
        %v681 = vmul.f32 %v333, %v678
        %v682 = vmul.f32 %v334, %v678
        %v683 = vrcp.pop %v619
        %v684 = vmul.f32 %v335, %v683
        %v685 = vmul.f32 %v336, %v683
        %v686 = vmul.f32 %v337, %v683
        %v687 = vmul.f32 %v338, %v683
        %v688 = vrcp.pop %v620
        %v689 = vmul.f32 %v339, %v688
        %v690 = vmul.f32 %v340, %v688
        %v691 = vmul.f32 %v341, %v688
        %v692 = vmul.f32 %v342, %v688
        %v693 = vrcp.pop %v621
        %v694 = vmul.f32 %v343, %v693
        %v695 = vmul.f32 %v344, %v693
        %v696 = vmul.f32 %v345, %v693
        %v697 = vmul.f32 %v346, %v693
        %v698 = vrcp.pop %v622
        %v699 = vmul.f32 %v347, %v698
        %v700 = vmul.f32 %v348, %v698
        %v701 = vmul.f32 %v349, %v698
        %v702 = vmul.f32 %v350, %v698
        %v703 = vpack.c.bf16 %v283, %v283
        %v704 = vpack.c.bf16 %v284, %v284
        %v705 = vpack.c.bf16 %v285, %v285
        %v706 = vpack.c.bf16 %v286, %v286
        %v707 = vpack.c.bf16 %v629, %v624
        %v708 = vpack.c.bf16 %v630, %v625
        %v709 = vpack.c.bf16 %v631, %v626
        %v710 = vpack.c.bf16 %v632, %v627
        %v711 = vpack.c.bf16 %v639, %v634
        %v712 = vpack.c.bf16 %v640, %v635
        %v713 = vpack.c.bf16 %v641, %v636
        %v714 = vpack.c.bf16 %v642, %v637
        %v715 = vpack.c.bf16 %v649, %v644
        %v716 = vpack.c.bf16 %v650, %v645
        %v717 = vpack.c.bf16 %v651, %v646
        %v718 = vpack.c.bf16 %v652, %v647
        %v719 = vpack.c.bf16 %v659, %v654
        %v720 = vpack.c.bf16 %v660, %v655
        %v721 = vpack.c.bf16 %v661, %v656
        %v722 = vpack.c.bf16 %v662, %v657
        %v723 = vpack.c.bf16 %v669, %v664
        %v724 = vpack.c.bf16 %v670, %v665
        %v725 = vpack.c.bf16 %v671, %v666
        %v726 = vpack.c.bf16 %v672, %v667
        %v727 = vpack.c.bf16 %v679, %v674
        %v728 = vpack.c.bf16 %v680, %v675
        %v729 = vpack.c.bf16 %v681, %v676
        %v730 = vpack.c.bf16 %v682, %v677
        %v731 = vpack.c.bf16 %v689, %v684
        %v732 = vpack.c.bf16 %v690, %v685
        %v733 = vpack.c.bf16 %v691, %v686
        %v734 = vpack.c.bf16 %v692, %v687
        %v735 = vpack.c.bf16 %v699, %v694
        %v736 = vpack.c.bf16 %v700, %v695
        %v737 = vpack.c.bf16 %v701, %v696
        %v738 = vpack.c.bf16 %v702, %v697
        %739 = vmatprep.subr.bf16.mxu0 %v736
        %740 = vmatpush1.bf16.xpose.msra.mxu0 %v735
        %741 = vmatprep.subr.bf16.mxu0 %v732
        %742 = vmatpush1.bf16.xpose.msra.mxu0 %v731
        %743 = vmatprep.subr.bf16.mxu0 %v728
        %744 = vmatpush1.bf16.xpose.msra.mxu0 %v727
        %745 = vmatprep.subr.bf16.mxu0 %v724
        %746 = vmatpush1.bf16.xpose.msra.mxu0 %v723
        %747 = vmatprep.subr.bf16.mxu0 %v720
        %748 = vmatpush1.bf16.xpose.msra.mxu0 %v719
        %749 = vmatprep.subr.bf16.mxu0 %v716
        %750 = vmatpush1.bf16.xpose.msra.mxu0 %v715
        %751 = vmatprep.subr.bf16.mxu0 %v712
        %752 = vmatpush1.bf16.xpose.msra.mxu0 %v711
        %753 = vmatprep.subr.bf16.mxu0 %v708
        %754 = vmatpush1.bf16.xpose.msra.mxu0 %v707
        %755 = vmatprep.subr.bf16.mxu0 0
        %756 = vmatpush2.bf16.xpose.msra.mxu0 0
        %757 = vmatprep.subr.bf16.mxu0 0
        %758 = vmatpush2.bf16.xpose.msra.mxu0 0
        %759 = vmatprep.subr.bf16.mxu0 0
        %760 = vmatpush2.bf16.xpose.msra.mxu0 0
        %761 = vmatprep.subr.bf16.mxu0 0
        %762 = vmatpush2.bf16.xpose.msra.mxu0 0
        %763 = vmatprep.subr.bf16.mxu0 0
        %764 = vmatpush2.bf16.xpose.msra.mxu0 0
        %765 = vmatprep.subr.bf16.mxu0 0
        %766 = vmatpush2.bf16.xpose.msra.mxu0 0
        %767 = vmatprep.subr.bf16.mxu0 0
        %768 = vmatpush2.bf16.xpose.msra.mxu0 0
        %769 = vmatprep.subr.bf16.mxu0 0
        %770 = vmatpush2.bf16.xpose.msra.mxu0 0
        %771 = vmatprep.mubr.bf16.mxu0 %v704
        %772 = vmatmul.mubr.bf16.gmra.mxu0 %v703
        %v773 = vpop.f32.mrf.mxu0
        %v774 = vadd.f32 0.0, %v773
        %v775 = vpop.f32.mrf.mxu0
        %v776 = vpop.f32.mrf.mxu0
        %v777 = vpop.f32.mrf.mxu0
        %778 = vdwg.mxu0
        %779 = vmatprep.subr.bf16.mxu0 %v738
        %780 = vmatpush1.bf16.xpose.msra.mxu0 %v737
        %781 = vmatprep.subr.bf16.mxu0 %v734
        %782 = vmatpush1.bf16.xpose.msra.mxu0 %v733
        %783 = vmatprep.subr.bf16.mxu0 %v730
        %784 = vmatpush1.bf16.xpose.msra.mxu0 %v729
        %785 = vmatprep.subr.bf16.mxu0 %v726
        %786 = vmatpush1.bf16.xpose.msra.mxu0 %v725
        %787 = vmatprep.subr.bf16.mxu0 %v722
        %788 = vmatpush1.bf16.xpose.msra.mxu0 %v721
        %789 = vmatprep.subr.bf16.mxu0 %v718
        %790 = vmatpush1.bf16.xpose.msra.mxu0 %v717
        %791 = vmatprep.subr.bf16.mxu0 %v714
        %792 = vmatpush1.bf16.xpose.msra.mxu0 %v713
        %793 = vmatprep.subr.bf16.mxu0 %v710
        %794 = vmatpush1.bf16.xpose.msra.mxu0 %v709
        %795 = vmatprep.subr.bf16.mxu0 0
        %796 = vmatpush2.bf16.xpose.msra.mxu0 0
        %797 = vmatprep.subr.bf16.mxu0 0
        %798 = vmatpush2.bf16.xpose.msra.mxu0 0
        %799 = vmatprep.subr.bf16.mxu0 0
        %800 = vmatpush2.bf16.xpose.msra.mxu0 0
        %801 = vmatprep.subr.bf16.mxu0 0
        %802 = vmatpush2.bf16.xpose.msra.mxu0 0
        %803 = vmatprep.subr.bf16.mxu0 0
        %804 = vmatpush2.bf16.xpose.msra.mxu0 0
        %805 = vmatprep.subr.bf16.mxu0 0
        %806 = vmatpush2.bf16.xpose.msra.mxu0 0
        %807 = vmatprep.subr.bf16.mxu0 0
        %808 = vmatpush2.bf16.xpose.msra.mxu0 0
        %809 = vmatprep.subr.bf16.mxu0 0
        %810 = vmatpush2.bf16.xpose.msra.mxu0 0
        %811 = vmatprep.mubr.bf16.mxu0 %v706
        %812 = vmatmul.mubr.bf16.gmra.mxu0 %v705
        %v813 = vpop.f32.mrf.mxu0
        %v814 = vadd.f32 %v774, %v813
        %v815 = vpop.f32.mrf.mxu0
        %v816 = vpop.f32.mrf.mxu0
        %v817 = vpop.f32.mrf.mxu0
        %818 = vdwg.mxu0
        %v819 = vmul.f32 %v814, %v814
        %v820 = vsub.f32 1.0, %v819
        %v821 = vmax.f32 %v820, 0.0
        %v822 = vmin.f32 %v821, 1.0
        %v823 = vrsqrt.pop %v822
        %v824 = vmul.f32 %v822, %v823
        %vm825 = vcmp.eq.f32.partialorder %v822, inf
        %v826 = vsel %vm825, %v822, %v824
        %vm827 = vcmp.eq.f32.partialorder %v822, 0.0
        %v828 = vand.u32 %v822, 2147483648
        %v829 = vsel %vm827, %v828, %v826
        %v830 = vmul.f32 %v814, 0.87758255
        %v831 = vmul.f32 %v829, 0.47942555
        %v832 = vsub.f32 %v830, %v831
        %vm833 = vcmp.gt.f32.partialorder %v814, -0.87758255
        %v834 = vsub.f32 %v814, 0.23971277
        %v835 = vsel %vm833, %v832, %v834
        %s836 = smul.u32 %s28, 128
        %v837 = vlaneseq
        %v838 = vand.u32 %v837, 127
        %v839 = vstv %s836
        %v840 = vadd.s32 %v839, %v838
        %v841 = vld [vmem:[%s259] sm:$0xff]
        %842 = vset.pattern.permute.xlu0 0
        %843 = vperm.xlu0 %842, %v841
        %v844 = vpop.permute.xlu0 %843
        %vm845 = vcmp.eq.s32.totalorder %v840, %v844
        %v846 = vsel %vm845, %v835, %v814
        %v847 = vmul.f32 %v846, 30.0
        %848 = vst [vmem:[%s254] sm:$0xff] %v847
        %s849 = sand.u32 %s123, 1
        %s850 = scalar_lea.sflag [#allocation4], %s849
        %s851 = sand.u32 %s123, 1
        %s852 = smul.addr %s851, 8
        %s853 = scalar_lea.vmem [#allocation7], %s852
        // Predicated region
        $region41: #{tpu_custom_call.1} parent=31 // pred_check
          %p854 = pneg %p133
        $region42: #{tpu_custom_call.1} parent=31 // pred_check_branch
          %856 = sbr.rel (%p854) target = $region44
        $region43: #{tpu_custom_call.1} parent=31 // pred_region
          %s858 = ssub.s32 128, 128
          %859 = vsyncadd %s850, %s858
          %s860 = smul.addr %s27, 2
          %s861 = sadd.s32 %s28, %s860
          %s862 = smul.addr %s861, 128
          %s863 = scalar_lea.hbm %s3, %s862
          %s865 = sshll.u32 %s853, 4
          %s866 = int_to_ptr.vmem [resolvable:$true] %s865
          %868 = dma.vmem_to_hbm [thread:$0]  %s866, 128, %s863, %s850
        $region44: #{tpu_custom_call.1} parent=31 // pred_fallthru
          _
      $region32: #{tpu_custom_call.1} parent=5 // pred_fallthru
        _
      %p869 = scmp.le.s32.totalorder 2, %s18
      // Predicated region
      $region45: #{tpu_custom_call.1} parent=5 // pred_check
        %p870 = pneg %p869
      $region46: #{tpu_custom_call.1} parent=5 // pred_check_branch
        %872 = sbr.rel (%p870) target = $region48
      $region47: #{tpu_custom_call.1} parent=5 // pred_region
        %s873 = ssub.s32 %s18, 2
        // Predicated region
        $region49: #{tpu_custom_call.1} parent=47 // pred_check
          %p874 = pneg %p139
        $region50: #{tpu_custom_call.1} parent=47 // pred_check_branch
          %876 = sbr.rel (%p874) target = $region52
        $region51: #{tpu_custom_call.1} parent=47 // pred_region
          %s877 = sand.u32 %s124, 1
          %s878 = scalar_lea.sflag [#allocation4], %s877
          %s879 = sand.u32 %s124, 1
          %s880 = smul.addr %s879, 8
          %s881 = scalar_lea.vmem [#allocation7], %s880
          %882 = dma.done %s878, 128
        $region52: #{tpu_custom_call.1} parent=47 // pred_fallthru
          _
      $region48: #{tpu_custom_call.1} parent=5 // pred_fallthru
        _
    $region6: #{tpu_custom_call.1} parent=1 // loop_footer
      %s22 = sadd.s32 1, %s18
    $region7: #{tpu_custom_call.1} parent=1 // loop_footer_branch
      %17 = sbr.rel target = $region3
    $region8: #{tpu_custom_call.1} parent=1 // loop_exit
      _
    %883 = vsyncpa [#allocation3], 1
    %s884 = scalar_lea.sflag [#allocation3], 1
    %885 = vsyncpa %s884, 1
    %886 = vsyncpa [#allocation6], 1
    %s887 = scalar_lea.sflag [#allocation6], 1
    %888 = vsyncpa %s887, 1
    %889 = vsyncpa [#allocation4], 1
    %s890 = scalar_lea.sflag [#allocation4], 1
    %891 = vsyncpa %s890, 1

</llo_original>
